<compile_context>
chip_gen: v5e
topology: v5e:2x2
jax: 0.10.0
libtpu: 0.0.40
codegen_flags: <defaults>
</compile_context>

<pallas_src>
import jax
import jax.numpy as jnp
from jax import lax
from jax.experimental import pallas as pl
from jax.experimental.pallas import tpu as pltpu


_VMEM_LIMIT_BYTES = 48 * 1024 * 1024  # < v7x 64 MiB physical, >> default 32 MiB scoped


def _round_up(x, m):
    return ((x + m - 1) // m) * m


def _pick_tile_m(m_rows, ps, kc, cout, out_bytes, vmem_budget_bytes=20 << 20):
    """Pooled rows per pass-2 grid step, derived from a VMEM budget.

    Dominant per-pooled-row VMEM: the f32 conv/ReLU temporary (ps*cout*4), the
    double-buffered bf16 patch block (2*ps*kc*2) and the double-buffered output block
    (2*cout*out_bytes)."""
    per_row = ps * cout * 4 + 2 * ps * kc * 2 + 2 * cout * out_bytes
    tile = vmem_budget_bytes // per_row
    tile = max(8, min(1024, tile))
    tile = min(tile, _round_up(m_rows, 8))
    return max(8, (tile // 8) * 8)


# ---------------------------------------------------------------------------
# Pass 1: per-channel sum and sum-of-squares of the fused conv output.
# Grid = (2 partials [parallel], row tiles [arbitrary]); accumulators are resident
# across the arbitrary axis and reduced over the 2 partials in the wrapper.
# ---------------------------------------------------------------------------
def _conv_stats_kernel(p_ref, w_ref, sum_ref, ssq_ref):
    # p_ref : (TILE_S, KC)   bf16 im2col patches (zero rows contribute exactly 0)
    # w_ref : (KC, Cout)     bf16 fused conv weights
    # sum_ref, ssq_ref : (1, 1, Cout) f32 partial accumulators
    @pl.when(pl.program_id(1) == 0)
    def _():
        sum_ref[...] = jnp.zeros_like(sum_ref)
        ssq_ref[...] = jnp.zeros_like(ssq_ref)

    conv = jnp.dot(p_ref[...], w_ref[...], preferred_element_type=jnp.float32)
    sum_ref[...] += jnp.sum(conv, axis=0, keepdims=True)[None]
    ssq_ref[...] += jnp.sum(conv * conv, axis=0, keepdims=True)[None]


# ---------------------------------------------------------------------------
# Pass 2: fused conv -> BN affine -> ReLU -> MaxPool1d(pool_size), one MXU dot per tile.
# ---------------------------------------------------------------------------
def _conv_norm_pool_kernel(p_ref, w_ref, scale_ref, off_ref, o_ref):
    # p_ref : (ps, TILE_M, KC) bf16, pool-position-major so the pool is a max over
    #         contiguous, sublane-aligned TILE_M-row slices (no relayout).
    # scale_ref / off_ref : (1, Cout) f32 fused BN scale / offset
    # o_ref : (TILE_M, Cout) bf16 pooled output (lane-dense, Cout multiple of 128)
    ps, tm, kc = p_ref.shape
    p2 = p_ref[...].reshape(ps * tm, kc)          # free: collapses leading dims, tm % 8 == 0
    conv = jnp.dot(p2, w_ref[...], preferred_element_type=jnp.float32)
    y = jnp.maximum(conv * scale_ref[...] + off_ref[...], 0.0)
    pooled = y[:tm]
    for p in range(1, ps):                        # ps-1 vector maxima, static trip count
        pooled = jnp.maximum(pooled, y[p * tm:(p + 1) * tm])
    o_ref[...] = pooled.astype(o_ref.dtype)


# ---------------------------------------------------------------------------
# Fused Encoder forward (channel-last in, channel-last out).
# ---------------------------------------------------------------------------
def encoder_forward(x_nlc, params, *, pool_size, eps=1e-5, out_dtype=jnp.bfloat16):
    """Encoder.forward, all ConvBlocks fused.

    x_nlc : (N, L, Cin) -- the layout the PyTorch Encoder receives (it transposes to NCL
            internally; we stay channel-last throughout).
    params: list of (w, b, gamma, beta) with w: (Cout_b, Cin, K_b).
    Returns (N, L // pool_size, sum_b Cout_b), channel-last (CNNTRFM_v2 transposes the
    NCL encoder output straight back to channel-last before fc1, so no NCL round trip).

    Conv1d biases are accepted but unused: train-mode BatchNorm subtracts the per-channel
    batch mean, which cancels them exactly.  BN running stats are not updated (forward
    parity only).
    """
    N, L, Cin = x_nlc.shape
    ps = pool_size
    assert L >= ps, "sequence too short for MaxPool1d"
    ksizes = [w.shape[-1] for (w, _, _, _) in params]
    K_max = max(ksizes)
    KC = K_max * Cin
    Cout = sum(w.shape[0] for (w, _, _, _) in params)
    L_pool = L // ps
    Lc = -(-L // ps)                                            # ceil(L / ps)

    # ---- shared im2col patches, PyTorch 'same' padding for K_max (built once) ----
    pad_l = (K_max - 1) // 2
    pad_r = (K_max - 1) - pad_l
    x_pad = jnp.pad(x_nlc.astype(jnp.float32), ((0, 0), (pad_l, pad_r), (0, 0)))
    patches = jnp.stack([x_pad[:, k:k + L, :] for k in range(K_max)], axis=2)
    patches = patches.reshape(N, L, KC)                         # (N, L, K_max*Cin)

    # Pool-position-major row layout (ps, N*Lc, KC).  Phantom rows (t >= L and tile
    # padding) are all-zero patches -> conv == 0 exactly (no bias), so they add nothing
    # to the BN sums; we divide by the true count N*L.
    patches = jnp.pad(patches, ((0, 0), (0, Lc * ps - L), (0, 0)))
    patches = patches.reshape(N, Lc, ps, KC)
    patches = jnp.transpose(patches, (2, 0, 1, 3)).reshape(ps, N * Lc, KC)

    M = N * Lc
    out_bytes = jnp.dtype(out_dtype).itemsize
    tile_m = _pick_tile_m(M, ps, KC, Cout, out_bytes)
    n_tiles = -(-M // tile_m)
    n_tiles += n_tiles % 2                                      # even -> 2-way pass-1 split
    Mp = n_tiles * tile_m
    patches = jnp.pad(patches, ((0, 0), (0, Mp - M), (0, 0)))
    patches_bf = patches.astype(jnp.bfloat16)                   # (ps, Mp, KC)
    patches_2d = patches_bf.reshape(ps * Mp, KC)                # free leading-dim collapse

    # ---- fused weight matrix: each block at its own 'same' offset inside K_max rows ----
    w_cols, gammas, betas = [], [], []
    for (w, _b, g, bt) in params:
        Cout_b, Cin_w, K_b = w.shape
        assert Cin_w == Cin
        off = pad_l - (K_b - 1) // 2                            # per-block 'same' offset
        wt = jnp.transpose(w, (2, 1, 0))                        # (K_b, Cin, Cout_b)
        wt = jnp.pad(wt, ((off, K_max - K_b - off), (0, 0), (0, 0)))
        w_cols.append(wt.reshape(KC, Cout_b))
        gammas.append(g)
        betas.append(bt)
    w2 = jnp.concatenate(w_cols, axis=1).astype(jnp.bfloat16)   # (KC, Cout)
    gamma = jnp.concatenate(gammas).reshape(1, Cout).astype(jnp.float32)
    beta = jnp.concatenate(betas).reshape(1, Cout).astype(jnp.float32)

    f32 = jnp.float32
    tile_s = ps * tile_m
    n_sub = n_tiles // 2

    # ---- pass 1: per-channel sum / sum-of-squares (2 parallel partials) ----
    sum_p, ssq_p = pl.pallas_call(
        _conv_stats_kernel,
        out_shape=(jax.ShapeDtypeStruct((2, 1, Cout), f32),
                   jax.ShapeDtypeStruct((2, 1, Cout), f32)),
        grid=(2, n_sub),
        in_specs=[pl.BlockSpec((tile_s, KC), lambda p, i: (p * n_sub + i, 0)),
                  pl.BlockSpec((KC, Cout), lambda p, i: (0, 0))],
        out_specs=[pl.BlockSpec((1, 1, Cout), lambda p, i: (p, 0, 0)),
                   pl.BlockSpec((1, 1, Cout), lambda p, i: (p, 0, 0))],
        compiler_params=pltpu.CompilerParams(
            dimension_semantics=("parallel", "arbitrary"),
            vmem_limit_bytes=_VMEM_LIMIT_BYTES),
        cost_estimate=pl.CostEstimate(
            flops=2 * ps * Mp * KC * Cout + 3 * ps * Mp * Cout,
            transcendentals=0,
            bytes_accessed=ps * Mp * KC * 2 + KC * Cout * 2 + 4 * Cout * 4),
    )(patches_2d, w2)

    # ---- fold train-mode BN (biased batch variance) into per-channel scale/offset ----
    # NOTE: single-pass E[x^2]-E[x]^2 in f32; adequate here because the conv output is
    # near zero-mean (zero-mean-ish inputs, bias cancelled).
    count = float(N * L)
    sum_c = jnp.sum(sum_p, axis=0)                              # (1, Cout)
    ssq_c = jnp.sum(ssq_p, axis=0)
    mean = sum_c / count
    var = jnp.maximum(ssq_c / count - mean * mean, 0.0)
    scale = gamma * lax.rsqrt(var + eps)
    offset = beta - mean * scale

    # ---- pass 2: conv -> scale/offset -> ReLU -> max-pool, one dot per tile ----
    pooled = pl.pallas_call(
        _conv_norm_pool_kernel,
        out_shape=jax.ShapeDtypeStruct((Mp, Cout), out_dtype),
        grid=(n_tiles,),
        in_specs=[pl.BlockSpec((ps, tile_m, KC), lambda i: (0, i, 0)),
                  pl.BlockSpec((KC, Cout), lambda i: (0, 0)),
                  pl.BlockSpec((1, Cout), lambda i: (0, 0)),
                  pl.BlockSpec((1, Cout), lambda i: (0, 0))],
        out_specs=pl.BlockSpec((tile_m, Cout), lambda i: (i, 0)),
        compiler_params=pltpu.CompilerParams(
            dimension_semantics=("parallel",),
            vmem_limit_bytes=_VMEM_LIMIT_BYTES),
        cost_estimate=pl.CostEstimate(
            flops=2 * ps * Mp * KC * Cout + 4 * ps * Mp * Cout,
            transcendentals=0,
            bytes_accessed=(ps * Mp * KC * 2 + KC * Cout * 2 + 2 * Cout * 4
                            + Mp * Cout * out_bytes)),
    )(patches_bf, w2, scale, offset)

    # (Mp, Cout) -> (N, Lc, Cout) -> keep the first L_pool pooled positions
    return pooled[:M].reshape(N, Lc, Cout)[:, :L_pool, :]       # channel-last


def conv_block_forward(x_ncl, w, b, gamma, beta, *, kernel_size, pool_size, eps=1e-5,
                       out_dtype=jnp.bfloat16):
    """Single ConvBlock forward, PyTorch NCL in / NCL out (thin wrapper on the fused path)."""
    assert w.shape[-1] == kernel_size
    x_nlc = jnp.transpose(x_ncl, (0, 2, 1))
    out = encoder_forward(x_nlc, [(w, b, gamma, beta)], pool_size=pool_size, eps=eps,
                          out_dtype=out_dtype)
    return jnp.transpose(out, (0, 2, 1))                        # (N, Cout, L_pool)


# ---------------------------------------------------------------------------
# Pure-JAX f32 reference mirroring the PyTorch ConvBlock (train-mode BN, with bias).
# ---------------------------------------------------------------------------
def _conv_block_reference(x, w, b, gamma, beta, *, kernel_size, pool_size, eps=1e-5):
    N, Cin, L = x.shape
    Cout = w.shape[0]
    K = kernel_size
    pad_l = (K - 1) // 2
    pad_r = (K - 1) - pad_l
    xp = jnp.pad(x.astype(jnp.float32), ((0, 0), (0, 0), (pad_l, pad_r)))
    conv = lax.conv_general_dilated(
        xp, w.astype(jnp.float32), window_strides=(1,), padding='VALID',
        dimension_numbers=('NCH', 'OIH', 'NCH')) + b[None, :, None]
    mean = conv.mean(axis=(0, 2), keepdims=True)
    var = ((conv - mean) ** 2).mean(axis=(0, 2), keepdims=True)
    y = (conv - mean) / jnp.sqrt(var + eps)
    y = y * gamma[None, :, None] + beta[None, :, None]
    y = jnp.maximum(y, 0.0)
    L_pool = L // pool_size
    y = y[:, :, :L_pool * pool_size].reshape(N, Cout, L_pool, pool_size)
    return y.max(axis=-1)


if __name__ == "__main__":
    kernel_sizes = [6, 9, 12, 15]       # Encoder defaults
    input_dim, out_dim, pool_size = 4, 256, 3
    N, L = 2, 25                        # small; exercises L % pool_size != 0 path

    key = jax.random.PRNGKey(0)
    keys = jax.random.split(key, 1 + 4 * len(kernel_sizes))
    x_nlc = jax.random.normal(keys[0], (N, L, input_dim), jnp.float32)
    x_ncl = jnp.transpose(x_nlc, (0, 2, 1))

    params = []
    ki = 1
    for ksz in kernel_sizes:
        w = 0.1 * jax.random.normal(keys[ki], (out_dim, input_dim, ksz), jnp.float32)
        b = 0.1 * jax.random.normal(keys[ki + 1], (out_dim,), jnp.float32)
        g = 1.0 + 0.1 * jax.random.normal(keys[ki + 2], (out_dim,), jnp.float32)
        bt = 0.1 * jax.random.normal(keys[ki + 3], (out_dim,), jnp.float32)
        params.append((w, b, g, bt))
        ki += 4

    L_pool = L // pool_size

    # Per-block f32 references (with bias, train-mode BN), concatenated like the Encoder.
    refs = [_conv_block_reference(x_ncl, w, b, g, bt, kernel_size=ksz, pool_size=pool_size)
            for (w, b, g, bt), ksz in zip(params, kernel_sizes)]
    ref_cat = jnp.concatenate(refs, axis=1)                      # (N, 4*Cout, L_pool)

    # Fused Encoder (one pair of Pallas calls for all four ConvBlocks), channel-last out.
    enc = encoder_forward(x_nlc, params, pool_size=pool_size)
    enc = jax.block_until_ready(enc)
    assert enc.shape == (N, L_pool, len(kernel_sizes) * out_dim), enc.shape
    enc_ncl = jnp.transpose(enc, (0, 2, 1)).astype(jnp.float32)
    err = float(jnp.max(jnp.abs(enc_ncl - ref_cat)))
    # bf16 matmul inputs + bf16 pooled output -> tolerance above pure f32.
    assert jnp.allclose(enc_ncl, ref_cat, rtol=5e-2, atol=5e-2), err

    # Single ConvBlock API parity (NCL in / NCL out).
    w1, b1, g1, bt1 = params[1]
    blk = conv_block_forward(x_ncl, w1, b1, g1, bt1,
                             kernel_size=kernel_sizes[1], pool_size=pool_size)
    blk = jax.block_until_ready(blk)
    assert blk.shape == (N, out_dim, L_pool), blk.shape
    assert jnp.allclose(blk.astype(jnp.float32), refs[1], rtol=5e-2, atol=5e-2)

    print("KERNEL_OK")
</pallas_src>

<mosaic_0001>
module attributes {stable_mosaic.version = 11 : i64} {
  func.func @_conv_stats_kernel(%arg0: i32, %arg1: i32, %arg2: memref<72x60xbf16, #tpu.memory_space<vmem>>, %arg3: memref<60x1024xbf16, #tpu.memory_space<vmem>>, %arg4: memref<1x1x1024xf32, #tpu.memory_space<vmem>>, %arg5: memref<1x1x1024xf32, #tpu.memory_space<vmem>>) attributes {dimension_semantics = [#tpu.dimension_semantics<parallel>, #tpu.dimension_semantics<arbitrary>], iteration_bounds = array<i64: 2, 1>, scalar_prefetch = 0 : i64, scratch_operands = 0 : i64, tpu.core_type = #tpu.core_type<tc>, window_params = [{transform_indices = @transform_0, window_bounds = array<i64: 72, 60>}, {pipeline_mode = #tpu.pipeline_mode<synchronous>, transform_indices = @transform_1, window_bounds = array<i64: 60, 1024>}, {transform_indices = @transform_2, window_bounds = array<i64: 1, 1, 1024>}, {transform_indices = @transform_3, window_bounds = array<i64: 1, 1, 1024>}]} {
    %c0_i32 = arith.constant 0 : i32
    %0 = arith.cmpi eq, %arg1, %c0_i32 : i32
    %1 = arith.extui %0 : i1 to i32
    %c0_i32_0 = arith.constant 0 : i32
    %2 = arith.cmpi ne, %1, %c0_i32_0 : i32
    scf.if %2 {
      %cst_18 = arith.constant 0.000000e+00 : f32
      %19 = vector.broadcast %cst_18 : f32 to vector<1x1x1024xf32>
      %c0_19 = arith.constant 0 : index
      %c0_20 = arith.constant 0 : index
      %c0_21 = arith.constant 0 : index
      %20 = vector.load %arg4[%c0_19, %c0_20, %c0_21] : memref<1x1x1024xf32, #tpu.memory_space<vmem>>, vector<1x1x1024xf32>
      tpu.vector_store %arg4[%c0_19, %c0_20, %c0_21], %19 {strides = array<i32>} : memref<1x1x1024xf32, #tpu.memory_space<vmem>>, vector<1x1x1024xf32>,
      %cst_22 = arith.constant 0.000000e+00 : f32
      %21 = vector.broadcast %cst_22 : f32 to vector<1x1x1024xf32>
      %c0_23 = arith.constant 0 : index
      %c0_24 = arith.constant 0 : index
      %c0_25 = arith.constant 0 : index
      %22 = vector.load %arg5[%c0_23, %c0_24, %c0_25] : memref<1x1x1024xf32, #tpu.memory_space<vmem>>, vector<1x1x1024xf32>
      tpu.vector_store %arg5[%c0_23, %c0_24, %c0_25], %21 {strides = array<i32>} : memref<1x1x1024xf32, #tpu.memory_space<vmem>>, vector<1x1x1024xf32>,
    } else {
    }
    %c0 = arith.constant 0 : index
    %c0_1 = arith.constant 0 : index
    %3 = vector.load %arg2[%c0, %c0_1] : memref<72x60xbf16, #tpu.memory_space<vmem>>, vector<72x60xbf16>
    %c0_2 = arith.constant 0 : index
    %c0_3 = arith.constant 0 : index
    %4 = vector.load %arg3[%c0_2, %c0_3] : memref<60x1024xbf16, #tpu.memory_space<vmem>>, vector<60x1024xbf16>
    %cst = arith.constant dense<0.000000e+00> : vector<72x1024xf32>
    %5 = tpu.matmul %3, %4, %cst {dimension_numbers = #tpu.dot_dimension_numbers<[1], [0], [0], [1], [0, 0, 1, 1], [], []>} : vector<72x60xbf16>, vector<60x1024xbf16>, vector<72x1024xf32> -> vector<72x1024xf32>
    %c0_4 = arith.constant 0 : index
    %c0_5 = arith.constant 0 : index
    %c0_6 = arith.constant 0 : index
    %6 = vector.load %arg4[%c0_4, %c0_5, %c0_6] : memref<1x1x1024xf32, #tpu.memory_space<vmem>>, vector<1x1x1024xf32>
    %cst_7 = arith.constant dense<0.000000e+00> : vector<1024xf32>
    %7 = vector.multi_reduction <add>, %5, %cst_7 [0] : vector<72x1024xf32> to vector<1024xf32>
    %8 = vector.shape_cast %7 : vector<1024xf32> to vector<1x1024xf32>
    %9 = vector.shape_cast %8 : vector<1x1024xf32> to vector<1x1x1024xf32>
    %10 = arith.addf %6, %9 : vector<1x1x1024xf32>
    %c0_8 = arith.constant 0 : index
    %c0_9 = arith.constant 0 : index
    %c0_10 = arith.constant 0 : index
    %11 = vector.load %arg4[%c0_8, %c0_9, %c0_10] : memref<1x1x1024xf32, #tpu.memory_space<vmem>>, vector<1x1x1024xf32>
    tpu.vector_store %arg4[%c0_8, %c0_9, %c0_10], %10 {strides = array<i32>} : memref<1x1x1024xf32, #tpu.memory_space<vmem>>, vector<1x1x1024xf32>,
    %c0_11 = arith.constant 0 : index
    %c0_12 = arith.constant 0 : index
    %c0_13 = arith.constant 0 : index
    %12 = vector.load %arg5[%c0_11, %c0_12, %c0_13] : memref<1x1x1024xf32, #tpu.memory_space<vmem>>, vector<1x1x1024xf32>
    %13 = arith.mulf %5, %5 : vector<72x1024xf32>
    %cst_14 = arith.constant dense<0.000000e+00> : vector<1024xf32>
    %14 = vector.multi_reduction <add>, %13, %cst_14 [0] : vector<72x1024xf32> to vector<1024xf32>
    %15 = vector.shape_cast %14 : vector<1024xf32> to vector<1x1024xf32>
    %16 = vector.shape_cast %15 : vector<1x1024xf32> to vector<1x1x1024xf32>
    %17 = arith.addf %12, %16 : vector<1x1x1024xf32>
    %c0_15 = arith.constant 0 : index
    %c0_16 = arith.constant 0 : index
    %c0_17 = arith.constant 0 : index
    %18 = vector.load %arg5[%c0_15, %c0_16, %c0_17] : memref<1x1x1024xf32, #tpu.memory_space<vmem>>, vector<1x1x1024xf32>
    tpu.vector_store %arg5[%c0_15, %c0_16, %c0_17], %17 {strides = array<i32>} : memref<1x1x1024xf32, #tpu.memory_space<vmem>>, vector<1x1x1024xf32>,
    return
  }
  func.func @transform_0(%arg0: i32, %arg1: i32) -> (i32, i32) {
    %c1_i32 = arith.constant 1 : i32
    %0 = arith.muli %arg0, %c1_i32 : i32
    %1 = arith.addi %0, %arg1 : i32
    %c0_i32 = arith.constant 0 : i32
    %c0_i32_0 = arith.constant 0 : i32
    return %1, %c0_i32 : i32, i32
  }
  func.func @transform_1(%arg0: i32, %arg1: i32) -> (i32, i32) {
    %c0_i32 = arith.constant 0 : i32
    %c0_i32_0 = arith.constant 0 : i32
    %c0_i32_1 = arith.constant 0 : i32
    return %c0_i32, %c0_i32_0 : i32, i32
  }
  func.func @transform_2(%arg0: i32, %arg1: i32) -> (i32, i32, i32) {
    %c0_i32 = arith.constant 0 : i32
    %c0_i32_0 = arith.constant 0 : i32
    %c0_i32_1 = arith.constant 0 : i32
    return %arg0, %c0_i32, %c0_i32_0 : i32, i32, i32
  }
  func.func @transform_3(%arg0: i32, %arg1: i32) -> (i32, i32, i32) {
    %c0_i32 = arith.constant 0 : i32
    %c0_i32_0 = arith.constant 0 : i32
    %c0_i32_1 = arith.constant 0 : i32
    return %arg0, %c0_i32, %c0_i32_0 : i32, i32, i32
  }
}

</mosaic_0001>

<llo_original>
// kernel: tpu_custom_call.1
$region0: #{tpu_custom_call.1}
  #allocation0 [shape = 'u32[]', space=smem, size = 0x4, offset = 0x4, fixed_abs, tag = 'smem constant byte address 0x4 - core index']
  #allocation1 [shape = 'u32[72,128]{1,0:T(1,128)}', space=vmem, size = 0x9000, scoped, tag = 'internal scratch']
  %s0 = inlined_call_operand.vmem [shape: bf16[144,60], index: 0, kind: input, shape index: {}]
  %s1 = inlined_call_operand.hbm [shape: bf16[60,1024], index: 1, kind: input, shape index: {}]
  %s2 = inlined_call_operand.hbm [shape: f32[2,1,1024], index: 2, kind: output, shape index: {0}]
  %s3 = inlined_call_operand.hbm [shape: f32[2,1,1024], index: 3, kind: output, shape index: {1}]
  %4 = xla_tuple %s2, %s3
  %s5 = sld [smem:[#allocation0]]
  $region57: #{tpu_custom_call.1} parent=0
    _
  %s7 = ssub.s32 1, %s5
  %s8 = scalar_select 0, %s7, %s5
  $region1: #{tpu_custom_call.1} parent=0
    #allocation2 [shape = 'u8[131072]{0}', space=vmem, size = 0x20000, scoped, tag = 'input window, operand 1, single buffered']
    #allocation3 [shape = 's32[2]{0}', space=sflag, size = 0x8, scoped, tag = 'scoped memory for tpu_custom_call.1']
    #allocation4 [shape = 's32[2]{0}', space=sflag, size = 0x8, scoped, tag = 'scoped memory for tpu_custom_call.1']
    #allocation5 [shape = 'u8[8192]{0}', space=vmem, size = 0x2000, scoped, tag = 'output window, operand 0']
    #allocation6 [shape = 'u8[8192]{0}', space=vmem, size = 0x2000, scoped, tag = 'output window, operand 1']
    #allocation7 [shape = 's32[2]{0}', space=sflag, size = 0x8, scoped, tag = 'scoped memory for tpu_custom_call.1']
    %9 = vsyncpa [#allocation3], 0
    %10 = vsyncpa [#allocation4], 0
    %s11 = scalar_lea.sflag [#allocation4], 1
    %12 = vsyncpa %s11, 0
    %13 = vsyncpa [#allocation7], 0
    %s14 = scalar_lea.sflag [#allocation7], 1
    %15 = vsyncpa %s14, 0
    loop: start=0, step=1, limit=4
    $region2: #{tpu_custom_call.1} parent=1 // loop_pre_header
      _
    $region3: #{tpu_custom_call.1} parent=1 // loop_header
      %s17 = sphi 0, %s21
      %p18 = scmp.ge.s32.totalorder %s17, 4
      %s24 = sphi 0, %s36
      %s25 = sphi 0, %s32
      %s26 = sphi 0, %s24
      %s27 = sphi 0, %s25
      %s28 = sphi 0, %s26
      %s29 = sphi 0, %s27
      %s41 = sphi 0, %s43
      %s44 = sphi 0, %s41
      %s45 = sphi 0, %s44
      %s61 = sphi 0, %s45
      %s65 = sphi 0, %s65
      %s67 = sphi 0, %s65
      %s68 = sphi 0, %s67
      %s82 = sphi 0, %s68
      %s88 = sphi 0, %s90
      %s91 = sphi 0, %s88
      %s92 = sphi 0, %s91
      %s108 = sphi 0, %s92
      %s114 = sphi 0, %s116
      %s117 = sphi 0, %s114
      %s118 = sphi 0, %s117
      %s134 = sphi 0, %s118
    $region4: #{tpu_custom_call.1} parent=1 // loop_header_branch
      %20 = sbr.rel (%p18) target = $region8
    $region5: #{tpu_custom_call.1} parent=1 // loop_body
      %s22 = ssub.s32 %s17, 1
      %s23 = ssub.s32 %s17, 2
      %s30 = sadd.s32 1, %s25
      %p31 = scmp.ge.s32.totalorder %s30, 1
      %s32 = scalar_select %p31, 0, %s30
      %s33 = sadd.s32 1, %s24
      %s34 = scalar_select %p31, %s33, %s24
      %p35 = scmp.ge.s32.totalorder %s34, 2
      %s36 = scalar_select %p35, 0, %s34
      %s37 = sadd.s32 %s24, %s25
      %s38 = sadd.s32 %s36, %s32
      %s39 = ssub.s32 %s37, %s38
      %p40 = scmp.eq.s32.totalorder %s39, 0
      %s42 = sadd.s32 %s41, 1
      %s43 = scalar_select %p40, %s41, %s42
      %p46 = pneg %p40
      %p47 = scmp.eq.s32.totalorder %s17, 1
      %p48 = por %p46, %p47
      %p49 = scmp.ne.s32.totalorder %s41, %s44
      %p50 = scmp.eq.s32.totalorder %s17, 0
      %p51 = por %p49, %p50
      %p52 = scmp.ne.s32.totalorder %s41, %s44
      %p53 = scmp.eq.s32.totalorder %s22, 1
      %p54 = por %p52, %p53
      %p55 = scmp.ne.s32.totalorder %s44, %s45
      %p56 = scmp.eq.s32.totalorder %s22, 0
      %p57 = por %p55, %p56
      %p58 = scmp.ne.s32.totalorder %s44, %s45
      %p59 = scmp.eq.s32.totalorder %s23, 1
      %p60 = por %p58, %p59
      %p62 = scmp.ne.s32.totalorder %s45, %s61
      %p63 = scmp.eq.s32.totalorder %s23, 0
      %p64 = por %p62, %p63
      %s66 = sadd.s32 %s65, 1
      %p69 = scmp.eq.s32.totalorder %s17, 1
      %p70 = scmp.ne.s32.totalorder %s65, %s67
      %p71 = scmp.eq.s32.totalorder %s17, 0
      %p72 = por %p70, %p71
      %p73 = scmp.ne.s32.totalorder %s65, %s67
      %p74 = scmp.eq.s32.totalorder %s22, 1
      %p75 = por %p73, %p74
      %p76 = scmp.ne.s32.totalorder %s67, %s68
      %p77 = scmp.eq.s32.totalorder %s22, 0
      %p78 = por %p76, %p77
      %p79 = scmp.ne.s32.totalorder %s67, %s68
      %p80 = scmp.eq.s32.totalorder %s23, 1
      %p81 = por %p79, %p80
      %p83 = scmp.ne.s32.totalorder %s68, %s82
      %p84 = scmp.eq.s32.totalorder %s23, 0
      %p85 = por %p83, %p84
      %s86 = ssub.s32 %s24, %s36
      %p87 = scmp.eq.s32.totalorder %s86, 0
      %s89 = sadd.s32 %s88, 1
      %s90 = scalar_select %p87, %s88, %s89
      %p93 = pneg %p87
      %p94 = scmp.eq.s32.totalorder %s17, 1
      %p95 = por %p93, %p94
      %p96 = scmp.ne.s32.totalorder %s88, %s91
      %p97 = scmp.eq.s32.totalorder %s17, 0
      %p98 = por %p96, %p97
      %p99 = scmp.ne.s32.totalorder %s88, %s91
      %p100 = scmp.eq.s32.totalorder %s22, 1
      %p101 = por %p99, %p100
      %p102 = scmp.ne.s32.totalorder %s91, %s92
      %p103 = scmp.eq.s32.totalorder %s22, 0
      %p104 = por %p102, %p103
      %p105 = scmp.ne.s32.totalorder %s91, %s92
      %p106 = scmp.eq.s32.totalorder %s23, 1
      %p107 = por %p105, %p106
      %p109 = scmp.ne.s32.totalorder %s92, %s108
      %p110 = scmp.eq.s32.totalorder %s23, 0
      %p111 = por %p109, %p110
      %s112 = ssub.s32 %s24, %s36
      %p113 = scmp.eq.s32.totalorder %s112, 0
      %s115 = sadd.s32 %s114, 1
      %s116 = scalar_select %p113, %s114, %s115
      %p119 = pneg %p113
      %p120 = scmp.eq.s32.totalorder %s17, 1
      %p121 = por %p119, %p120
      %p122 = scmp.ne.s32.totalorder %s114, %s117
      %p123 = scmp.eq.s32.totalorder %s17, 0
      %p124 = por %p122, %p123
      %p125 = scmp.ne.s32.totalorder %s114, %s117
      %p126 = scmp.eq.s32.totalorder %s22, 1
      %p127 = por %p125, %p126
      %p128 = scmp.ne.s32.totalorder %s117, %s118
      %p129 = scmp.eq.s32.totalorder %s22, 0
      %p130 = por %p128, %p129
      %p131 = scmp.ne.s32.totalorder %s117, %s118
      %p132 = scmp.eq.s32.totalorder %s23, 1
      %p133 = por %p131, %p132
      %p135 = scmp.ne.s32.totalorder %s118, %s134
      %p136 = scmp.eq.s32.totalorder %s23, 0
      %p137 = por %p135, %p136
      %p138 = scmp.le.s32.totalorder 1, %s17
      %p139 = scmp.lt.s32.totalorder %s17, 3
      %p140 = pnand %p138, %p139
      %p141 = pneg %p140
      // Predicated region
      $region9: #{tpu_custom_call.1} parent=5 // pred_check
        _
      $region10: #{tpu_custom_call.1} parent=5 // pred_check_branch
        %143 = sbr.rel (%p140) target = $region12
      $region11: #{tpu_custom_call.1} parent=5 // pred_region
        %s144 = ssub.s32 %s17, 1
        // Predicated region
        $region13: #{tpu_custom_call.1} parent=11 // pred_check
          %p145 = pneg %p78
        $region14: #{tpu_custom_call.1} parent=11 // pred_check_branch
          %147 = sbr.rel (%p145) target = $region16
        $region15: #{tpu_custom_call.1} parent=11 // pred_region
          %149 = vsyncadd [#allocation3], 0
          %s150 = sshll.u32 %s1, 4
          %s151 = int_to_ptr.hbm [resolvable:$true] %s150
          %s152 = sshll.u32 [#allocation2], 4
          %s153 = int_to_ptr.vmem [resolvable:$true] %s152
          %158 = dma.hbm_to_vmem [thread:$0]  %s151, 4096, %s153, [#allocation3], 512, 512, 32
        $region16: #{tpu_custom_call.1} parent=11 // pred_fallthru
          _
      $region12: #{tpu_custom_call.1} parent=5 // pred_fallthru
        _
      %p159 = scmp.lt.s32.totalorder %s17, 2
      // Predicated region
      $region17: #{tpu_custom_call.1} parent=5 // pred_check
        %p160 = pneg %p159
      $region18: #{tpu_custom_call.1} parent=5 // pred_check_branch
        %162 = sbr.rel (%p160) target = $region20
      $region19: #{tpu_custom_call.1} parent=5 // pred_region
        // Predicated region
        $region21: #{tpu_custom_call.1} parent=19 // pred_check
          %p163 = pneg %p51
        $region22: #{tpu_custom_call.1} parent=19 // pred_check_branch
          %165 = sbr.rel (%p163) target = $region24
        $region23: #{tpu_custom_call.1} parent=19 // pred_region
          %s166 = sadd.s32 %s24, %s25
          %s167 = smul.u32 9, %s166
          %p168 = scmp.lt.s32.totalorder %s167, 17
          %s169 = scalar_select %p168, %s167, 17
          %s170 = smul.addr %s169, 4
          %s171 = scalar_lea.vmem %s0, %s170
          %s172 = sadd.s32 %s24, %s25
          %s173 = smul.u32 9, %s172
        $region24: #{tpu_custom_call.1} parent=19 // pred_fallthru
          _
      $region20: #{tpu_custom_call.1} parent=5 // pred_fallthru
        _
      %p174 = scmp.le.s32.totalorder 1, %s17
      %p175 = scmp.lt.s32.totalorder %s17, 3
      %p176 = pnand %p174, %p175
      %p177 = pneg %p176
      // Predicated region
      $region25: #{tpu_custom_call.1} parent=5 // pred_check
        _
      $region26: #{tpu_custom_call.1} parent=5 // pred_check_branch
        %179 = sbr.rel (%p176) target = $region28
      $region27: #{tpu_custom_call.1} parent=5 // pred_region
        %s180 = ssub.s32 %s17, 1
        // Predicated region
        $region29: #{tpu_custom_call.1} parent=27 // pred_check
          %p181 = pneg %p78
        $region30: #{tpu_custom_call.1} parent=27 // pred_check_branch
          %183 = sbr.rel (%p181) target = $region32
        $region31: #{tpu_custom_call.1} parent=27 // pred_region
          %185 = dma.done [#allocation3], 4096
        $region32: #{tpu_custom_call.1} parent=27 // pred_fallthru
          _
        %s186 = sadd.s32 %s26, %s27
        %s187 = smul.u32 9, %s186
        %p188 = scmp.lt.s32.totalorder %s187, 17
        %s189 = scalar_select %p188, %s187, 17
        %s190 = smul.addr %s189, 4
        %s191 = scalar_lea.vmem %s0, %s190
        %p192 = pneg %p57
        %p193 = pneg %p54
        %p194 = pneg %p78
        %p195 = pneg %p75
        %p196 = pneg %p104
        %p197 = pneg %p101
        %s198 = sand.u32 %s91, 1
        %s199 = scalar_lea.sflag [#allocation4], %s198
        %s200 = sand.u32 %s91, 1
        %s201 = smul.addr %s200, 8
        %s202 = scalar_lea.vmem [#allocation5], %s201
        %p203 = pneg %p130
        %p204 = pneg %p127
        %s205 = sand.u32 %s117, 1
        %s206 = scalar_lea.sflag [#allocation7], %s205
        %s207 = sand.u32 %s117, 1
        %s208 = smul.addr %s207, 8
        %s209 = scalar_lea.vmem [#allocation6], %s208
        %s210 = sadd.s32 %s26, %s27
        %s211 = smul.u32 9, %s210
        %p212 = scmp.lt.s32.totalorder %s211, 17
        %s213 = scalar_select %p212, %s211, 17
        %s214 = smul.addr %s213, 4
        %s215 = scalar_lea.vmem %s0, %s214
        %s216 = sadd.s32 %s26, %s27
        %s217 = smul.u32 9, %s216
        %p219 = scmp.eq.s32.totalorder %s27, 0
        // Predicated region
        $region33: #{tpu_custom_call.1} parent=27 // pred_check
          %p220 = pneg %p219
        $region34: #{tpu_custom_call.1} parent=27 // pred_check_branch
          %222 = sbr.rel (%p220) target = $region36
        $region35: #{tpu_custom_call.1} parent=27 // pred_region
          %223 = vst [vmem:[%s202] sm:$0xff] 0.0
          %224 = vst [vmem:[%s209] sm:$0xff] 0.0
        $region36: #{tpu_custom_call.1} parent=27 // pred_fallthru
          _
        %v225 = vld [vmem:[%s215] sm:$0xf]
        %v226 = vld [vmem:[%s215 + $0x4] sm:$0xf]
        %v227 = vld [vmem:[%s215 + $0x8] sm:$0xf]
        %v228 = vld [vmem:[%s215 + $0xc] sm:$0xf]
        %v229 = vld [vmem:[%s215 + $0x10] sm:$0xf]
        %v230 = vld [vmem:[%s215 + $0x14] sm:$0xf]
        %v231 = vld [vmem:[%s215 + $0x18] sm:$0xf]
        %v232 = vld [vmem:[%s215 + $0x1c] sm:$0xf]
        %v233 = vld [vmem:[%s215 + $0x20] sm:$0xf]
        %v234 = vld [vmem:[#allocation2] sm:$0xff]
        %v235 = vld [vmem:[#allocation2 + $0x8] sm:$0xff]
        %v236 = vld [vmem:[#allocation2 + $0x10] sm:$0xff]
        %v237 = vld [vmem:[#allocation2 + $0x18] sm:$0xff]
        %v238 = vld [vmem:[#allocation2 + $0x20] sm:$0xff]
        %v239 = vld [vmem:[#allocation2 + $0x28] sm:$0xff]
        %v240 = vld [vmem:[#allocation2 + $0x30] sm:$0xff]
        %v241 = vld [vmem:[#allocation2 + $0x38] sm:$0xff]
        %v242 = vld [vmem:[#allocation2 + $0x40] sm:$0xff]
        %v243 = vld [vmem:[#allocation2 + $0x48] sm:$0xff]
        %v244 = vld [vmem:[#allocation2 + $0x50] sm:$0xff]
        %v245 = vld [vmem:[#allocation2 + $0x58] sm:$0xff]
        %v246 = vld [vmem:[#allocation2 + $0x60] sm:$0xff]
        %v247 = vld [vmem:[#allocation2 + $0x68] sm:$0xff]
        %v248 = vld [vmem:[#allocation2 + $0x70] sm:$0xff]
        %v249 = vld [vmem:[#allocation2 + $0x78] sm:$0xff]
        %v250 = vld [vmem:[#allocation2 + $0x80] sm:$0xff]
        %v251 = vld [vmem:[#allocation2 + $0x88] sm:$0xff]
        %v252 = vld [vmem:[#allocation2 + $0x90] sm:$0xff]
        %v253 = vld [vmem:[#allocation2 + $0x98] sm:$0xff]
        %v254 = vld [vmem:[#allocation2 + $0xa0] sm:$0xff]
        %v255 = vld [vmem:[#allocation2 + $0xa8] sm:$0xff]
        %v256 = vld [vmem:[#allocation2 + $0xb0] sm:$0xff]
        %v257 = vld [vmem:[#allocation2 + $0xb8] sm:$0xff]
        %v258 = vld [vmem:[#allocation2 + $0xc0] sm:$0xff]
        %v259 = vld [vmem:[#allocation2 + $0xc8] sm:$0xff]
        %v260 = vld [vmem:[#allocation2 + $0xd0] sm:$0xff]
        %v261 = vld [vmem:[#allocation2 + $0xd8] sm:$0xff]
        %v262 = vld [vmem:[#allocation2 + $0xe0] sm:$0x33]
        %v263 = vld [vmem:[#allocation2 + $0xe8] sm:$0x33]
        %v264 = vld [vmem:[#allocation2 + $0xf0] sm:$0x33]
        %v265 = vld [vmem:[#allocation2 + $0xf8] sm:$0x33]
        %v275 = vunpack.c.l.b16 %v225
        %v276 = vunpack.c.l.b16 %v226
        %v277 = vunpack.c.l.b16 %v227
        %v278 = vunpack.c.l.b16 %v228
        %v279 = vunpack.c.l.b16 %v229
        %v280 = vunpack.c.l.b16 %v230
        %v281 = vunpack.c.l.b16 %v231
        %v282 = vunpack.c.l.b16 %v232
        %v283 = vunpack.c.l.b16 %v233
        %v284 = vpack.c.b16 %v276, %v275
        %v285 = vpack.c.b16 %v278, %v277
        %v286 = vpack.c.b16 %v280, %v279
        %v287 = vpack.c.b16 %v282, %v281
        %v288 = vpack.c.b16 %v283, %v283
        %v321 = vunpack.c.l.b16 %v234
        %v322 = vunpack.c.h.b16 %v234
        %v323 = vunpack.c.l.b16 %v235
        %v324 = vunpack.c.h.b16 %v235
        %v325 = vunpack.c.l.b16 %v236
        %v326 = vunpack.c.h.b16 %v236
        %v327 = vunpack.c.l.b16 %v237
        %v328 = vunpack.c.h.b16 %v237
        %v329 = vunpack.c.l.b16 %v238
        %v330 = vunpack.c.h.b16 %v238
        %v331 = vunpack.c.l.b16 %v239
        %v332 = vunpack.c.h.b16 %v239
        %v333 = vunpack.c.l.b16 %v240
        %v334 = vunpack.c.h.b16 %v240
        %v335 = vunpack.c.l.b16 %v241
        %v336 = vunpack.c.h.b16 %v241
        %v337 = vunpack.c.l.b16 %v242
        %v338 = vunpack.c.h.b16 %v242
        %v339 = vunpack.c.l.b16 %v243
        %v340 = vunpack.c.h.b16 %v243
        %v341 = vunpack.c.l.b16 %v244
        %v342 = vunpack.c.h.b16 %v244
        %v343 = vunpack.c.l.b16 %v245
        %v344 = vunpack.c.h.b16 %v245
        %v345 = vunpack.c.l.b16 %v246
        %v346 = vunpack.c.h.b16 %v246
        %v347 = vunpack.c.l.b16 %v247
        %v348 = vunpack.c.h.b16 %v247
        %v349 = vunpack.c.l.b16 %v248
        %v350 = vunpack.c.h.b16 %v248
        %v351 = vunpack.c.l.b16 %v249
        %v352 = vunpack.c.h.b16 %v249
        %v353 = vunpack.c.l.b16 %v250
        %v354 = vunpack.c.h.b16 %v250
        %v355 = vunpack.c.l.b16 %v251
        %v356 = vunpack.c.h.b16 %v251
        %v357 = vunpack.c.l.b16 %v252
        %v358 = vunpack.c.h.b16 %v252
        %v359 = vunpack.c.l.b16 %v253
        %v360 = vunpack.c.h.b16 %v253
        %v361 = vunpack.c.l.b16 %v254
        %v362 = vunpack.c.h.b16 %v254
        %v363 = vunpack.c.l.b16 %v255
        %v364 = vunpack.c.h.b16 %v255
        %v365 = vunpack.c.l.b16 %v256
        %v366 = vunpack.c.h.b16 %v256
        %v367 = vunpack.c.l.b16 %v257
        %v368 = vunpack.c.h.b16 %v257
        %v369 = vunpack.c.l.b16 %v258
        %v370 = vunpack.c.h.b16 %v258
        %v371 = vunpack.c.l.b16 %v259
        %v372 = vunpack.c.h.b16 %v259
        %v373 = vunpack.c.l.b16 %v260
        %v374 = vunpack.c.h.b16 %v260
        %v375 = vunpack.c.l.b16 %v261
        %v376 = vunpack.c.h.b16 %v261
        %v377 = vunpack.c.l.b16 %v262
        %v378 = vunpack.c.h.b16 %v262
        %v379 = vunpack.c.l.b16 %v263
        %v380 = vunpack.c.h.b16 %v263
        %v381 = vunpack.c.l.b16 %v264
        %v382 = vunpack.c.h.b16 %v264
        %v383 = vunpack.c.l.b16 %v265
        %v384 = vunpack.c.h.b16 %v265
        %v385 = vpack.c.b16 %v329, %v321
        %v386 = vpack.c.b16 %v330, %v322
        %v387 = vpack.c.b16 %v331, %v323
        %v388 = vpack.c.b16 %v332, %v324
        %v389 = vpack.c.b16 %v333, %v325
        %v390 = vpack.c.b16 %v334, %v326
        %v391 = vpack.c.b16 %v335, %v327
        %v392 = vpack.c.b16 %v336, %v328
        %v393 = vpack.c.b16 %v345, %v337
        %v394 = vpack.c.b16 %v346, %v338
        %v395 = vpack.c.b16 %v347, %v339
        %v396 = vpack.c.b16 %v348, %v340
        %v397 = vpack.c.b16 %v349, %v341
        %v398 = vpack.c.b16 %v350, %v342
        %v399 = vpack.c.b16 %v351, %v343
        %v400 = vpack.c.b16 %v352, %v344
        %v401 = vpack.c.b16 %v361, %v353
        %v402 = vpack.c.b16 %v362, %v354
        %v403 = vpack.c.b16 %v363, %v355
        %v404 = vpack.c.b16 %v364, %v356
        %v405 = vpack.c.b16 %v365, %v357
        %v406 = vpack.c.b16 %v366, %v358
        %v407 = vpack.c.b16 %v367, %v359
        %v408 = vpack.c.b16 %v368, %v360
        %v409 = vpack.c.b16 %v377, %v369
        %v410 = vpack.c.b16 %v378, %v370
        %v411 = vpack.c.b16 %v379, %v371
        %v412 = vpack.c.b16 %v380, %v372
        %v413 = vpack.c.b16 %v381, %v373
        %v414 = vpack.c.b16 %v382, %v374
        %v415 = vpack.c.b16 %v383, %v375
        %v416 = vpack.c.b16 %v384, %v376
        %vm441 = vcmask 490496
        %v443 = vsel %vm441, %v284, 0
        %v446 = vsel %vm441, %v285, 0
        %v449 = vsel %vm441, %v286, 0
        %v452 = vsel %vm441, %v287, 0
        %v455 = vsel %vm441, %v288, 0
        %vm457 = vcmask 1045504
        %v459 = vsel %vm457, %v409, 0
        %v462 = vsel %vm457, %v410, 0
        %v465 = vsel %vm457, %v411, 0
        %v468 = vsel %vm457, %v412, 0
        %v471 = vsel %vm457, %v413, 0
        %v474 = vsel %vm457, %v414, 0
        %v477 = vsel %vm457, %v415, 0
        %v480 = vsel %vm457, %v416, 0
        %482 = vmatpush.bf16.msra.mxu0 0
        %483 = vmatpush.bf16.msra.mxu0 0
        %484 = vmatpush.bf16.msra.mxu0 0
        %485 = vmatpush.bf16.msra.mxu0 0
        %486 = vmatpush.bf16.msra.mxu0 %v459
        %487 = vmatpush.bf16.msra.mxu0 %v401
        %488 = vmatpush.bf16.msra.mxu0 %v393
        %489 = vmatpush.bf16.msra.mxu0 %v385
        %490 = vmatmul.bf16.gmra.mxu0 %v443
        %v491 = vpop.f32.mrf.mxu0
        %v492 = vadd.f32 0.0, %v491
        %v493 = vpop.f32.mrf.mxu0
        %v494 = vadd.f32 0.0, %v493
        %495 = vmatmul.bf16.gmra.mxu0 %v446
        %v496 = vpop.f32.mrf.mxu0
        %v497 = vadd.f32 0.0, %v496
        %v498 = vpop.f32.mrf.mxu0
        %v499 = vadd.f32 0.0, %v498
        %500 = vmatmul.bf16.gmra.mxu0 %v449
        %v501 = vpop.f32.mrf.mxu0
        %v502 = vadd.f32 0.0, %v501
        %v503 = vpop.f32.mrf.mxu0
        %v504 = vadd.f32 0.0, %v503
        %505 = vmatmul.bf16.gmra.mxu0 %v452
        %v506 = vpop.f32.mrf.mxu0
        %v507 = vadd.f32 0.0, %v506
        %v508 = vpop.f32.mrf.mxu0
        %v509 = vadd.f32 0.0, %v508
        %510 = vmatmul.bf16.gmra.mxu0 %v455
        %v511 = vpop.f32.mrf.mxu0
        %v512 = vadd.f32 0.0, %v511
        %v513 = vpop.f32.mrf.mxu0
        %514 = vdwg.mxu0
        %515 = vmatpush.bf16.msra.mxu0 0
        %516 = vmatpush.bf16.msra.mxu0 0
        %517 = vmatpush.bf16.msra.mxu0 0
        %518 = vmatpush.bf16.msra.mxu0 0
        %519 = vmatpush.bf16.msra.mxu0 %v462
        %520 = vmatpush.bf16.msra.mxu0 %v402
        %521 = vmatpush.bf16.msra.mxu0 %v394
        %522 = vmatpush.bf16.msra.mxu0 %v386
        %523 = vmatmul.bf16.gmra.mxu0 %v443
        %v524 = vpop.f32.mrf.mxu0
        %v525 = vadd.f32 0.0, %v524
        %v526 = vpop.f32.mrf.mxu0
        %v527 = vadd.f32 0.0, %v526
        %528 = vmatmul.bf16.gmra.mxu0 %v446
        %v529 = vpop.f32.mrf.mxu0
        %v530 = vadd.f32 0.0, %v529
        %v531 = vpop.f32.mrf.mxu0
        %v532 = vadd.f32 0.0, %v531
        %533 = vmatmul.bf16.gmra.mxu0 %v449
        %v534 = vpop.f32.mrf.mxu0
        %v535 = vadd.f32 0.0, %v534
        %v536 = vpop.f32.mrf.mxu0
        %v537 = vadd.f32 0.0, %v536
        %538 = vmatmul.bf16.gmra.mxu0 %v452
        %v539 = vpop.f32.mrf.mxu0
        %v540 = vadd.f32 0.0, %v539
        %v541 = vpop.f32.mrf.mxu0
        %v542 = vadd.f32 0.0, %v541
        %543 = vmatmul.bf16.gmra.mxu0 %v455
        %v544 = vpop.f32.mrf.mxu0
        %v545 = vadd.f32 0.0, %v544
        %v546 = vpop.f32.mrf.mxu0
        %547 = vdwg.mxu0
        %548 = vmatpush.bf16.msra.mxu0 0
        %549 = vmatpush.bf16.msra.mxu0 0
        %550 = vmatpush.bf16.msra.mxu0 0
        %551 = vmatpush.bf16.msra.mxu0 0
        %552 = vmatpush.bf16.msra.mxu0 %v465
        %553 = vmatpush.bf16.msra.mxu0 %v403
        %554 = vmatpush.bf16.msra.mxu0 %v395
        %555 = vmatpush.bf16.msra.mxu0 %v387
        %556 = vmatmul.bf16.gmra.mxu0 %v443
        %v557 = vpop.f32.mrf.mxu0
        %v558 = vadd.f32 0.0, %v557
        %v559 = vpop.f32.mrf.mxu0
        %v560 = vadd.f32 0.0, %v559
        %561 = vmatmul.bf16.gmra.mxu0 %v446
        %v562 = vpop.f32.mrf.mxu0
        %v563 = vadd.f32 0.0, %v562
        %v564 = vpop.f32.mrf.mxu0
        %v565 = vadd.f32 0.0, %v564
        %566 = vmatmul.bf16.gmra.mxu0 %v449
        %v567 = vpop.f32.mrf.mxu0
        %v568 = vadd.f32 0.0, %v567
        %v569 = vpop.f32.mrf.mxu0
        %v570 = vadd.f32 0.0, %v569
        %571 = vmatmul.bf16.gmra.mxu0 %v452
        %v572 = vpop.f32.mrf.mxu0
        %v573 = vadd.f32 0.0, %v572
        %v574 = vpop.f32.mrf.mxu0
        %v575 = vadd.f32 0.0, %v574
        %576 = vmatmul.bf16.gmra.mxu0 %v455
        %v577 = vpop.f32.mrf.mxu0
        %v578 = vadd.f32 0.0, %v577
        %v579 = vpop.f32.mrf.mxu0
        %580 = vdwg.mxu0
        %581 = vmatpush.bf16.msra.mxu0 0
        %582 = vmatpush.bf16.msra.mxu0 0
        %583 = vmatpush.bf16.msra.mxu0 0
        %584 = vmatpush.bf16.msra.mxu0 0
        %585 = vmatpush.bf16.msra.mxu0 %v468
        %586 = vmatpush.bf16.msra.mxu0 %v404
        %587 = vmatpush.bf16.msra.mxu0 %v396
        %588 = vmatpush.bf16.msra.mxu0 %v388
        %589 = vmatmul.bf16.gmra.mxu0 %v443
        %v590 = vpop.f32.mrf.mxu0
        %v591 = vadd.f32 0.0, %v590
        %v592 = vpop.f32.mrf.mxu0
        %v593 = vadd.f32 0.0, %v592
        %594 = vmatmul.bf16.gmra.mxu0 %v446
        %v595 = vpop.f32.mrf.mxu0
        %v596 = vadd.f32 0.0, %v595
        %v597 = vpop.f32.mrf.mxu0
        %v598 = vadd.f32 0.0, %v597
        %599 = vmatmul.bf16.gmra.mxu0 %v449
        %v600 = vpop.f32.mrf.mxu0
        %v601 = vadd.f32 0.0, %v600
        %v602 = vpop.f32.mrf.mxu0
        %v603 = vadd.f32 0.0, %v602
        %604 = vmatmul.bf16.gmra.mxu0 %v452
        %v605 = vpop.f32.mrf.mxu0
        %v606 = vadd.f32 0.0, %v605
        %v607 = vpop.f32.mrf.mxu0
        %v608 = vadd.f32 0.0, %v607
        %609 = vmatmul.bf16.gmra.mxu0 %v455
        %v610 = vpop.f32.mrf.mxu0
        %v611 = vadd.f32 0.0, %v610
        %v612 = vpop.f32.mrf.mxu0
        %613 = vdwg.mxu0
        %614 = vmatpush.bf16.msra.mxu0 0
        %615 = vmatpush.bf16.msra.mxu0 0
        %616 = vmatpush.bf16.msra.mxu0 0
        %617 = vmatpush.bf16.msra.mxu0 0
        %618 = vmatpush.bf16.msra.mxu0 %v471
        %619 = vmatpush.bf16.msra.mxu0 %v405
        %620 = vmatpush.bf16.msra.mxu0 %v397
        %621 = vmatpush.bf16.msra.mxu0 %v389
        %622 = vmatmul.bf16.gmra.mxu0 %v443
        %v623 = vpop.f32.mrf.mxu0
        %v624 = vadd.f32 0.0, %v623
        %v625 = vpop.f32.mrf.mxu0
        %v626 = vadd.f32 0.0, %v625
        %627 = vmatmul.bf16.gmra.mxu0 %v446
        %v628 = vpop.f32.mrf.mxu0
        %v629 = vadd.f32 0.0, %v628
        %v630 = vpop.f32.mrf.mxu0
        %v631 = vadd.f32 0.0, %v630
        %632 = vmatmul.bf16.gmra.mxu0 %v449
        %v633 = vpop.f32.mrf.mxu0
        %v634 = vadd.f32 0.0, %v633
        %v635 = vpop.f32.mrf.mxu0
        %v636 = vadd.f32 0.0, %v635
        %637 = vmatmul.bf16.gmra.mxu0 %v452
        %v638 = vpop.f32.mrf.mxu0
        %v639 = vadd.f32 0.0, %v638
        %v640 = vpop.f32.mrf.mxu0
        %v641 = vadd.f32 0.0, %v640
        %642 = vmatmul.bf16.gmra.mxu0 %v455
        %v643 = vpop.f32.mrf.mxu0
        %v644 = vadd.f32 0.0, %v643
        %v645 = vpop.f32.mrf.mxu0
        %646 = vdwg.mxu0
        %647 = vmatpush.bf16.msra.mxu0 0
        %648 = vmatpush.bf16.msra.mxu0 0
        %649 = vmatpush.bf16.msra.mxu0 0
        %650 = vmatpush.bf16.msra.mxu0 0
        %651 = vmatpush.bf16.msra.mxu0 %v474
        %652 = vmatpush.bf16.msra.mxu0 %v406
        %653 = vmatpush.bf16.msra.mxu0 %v398
        %654 = vmatpush.bf16.msra.mxu0 %v390
        %655 = vmatmul.bf16.gmra.mxu0 %v443
        %v656 = vpop.f32.mrf.mxu0
        %v657 = vadd.f32 0.0, %v656
        %v658 = vpop.f32.mrf.mxu0
        %v659 = vadd.f32 0.0, %v658
        %660 = vmatmul.bf16.gmra.mxu0 %v446
        %v661 = vpop.f32.mrf.mxu0
        %v662 = vadd.f32 0.0, %v661
        %v663 = vpop.f32.mrf.mxu0
        %v664 = vadd.f32 0.0, %v663
        %665 = vmatmul.bf16.gmra.mxu0 %v449
        %v666 = vpop.f32.mrf.mxu0
        %v667 = vadd.f32 0.0, %v666
        %v668 = vpop.f32.mrf.mxu0
        %v669 = vadd.f32 0.0, %v668
        %670 = vmatmul.bf16.gmra.mxu0 %v452
        %v671 = vpop.f32.mrf.mxu0
        %v672 = vadd.f32 0.0, %v671
        %v673 = vpop.f32.mrf.mxu0
        %v674 = vadd.f32 0.0, %v673
        %675 = vmatmul.bf16.gmra.mxu0 %v455
        %v676 = vpop.f32.mrf.mxu0
        %v677 = vadd.f32 0.0, %v676
        %v678 = vpop.f32.mrf.mxu0
        %679 = vdwg.mxu0
        %680 = vmatpush.bf16.msra.mxu0 0
        %681 = vmatpush.bf16.msra.mxu0 0
        %682 = vmatpush.bf16.msra.mxu0 0
        %683 = vmatpush.bf16.msra.mxu0 0
        %684 = vmatpush.bf16.msra.mxu0 %v477
        %685 = vmatpush.bf16.msra.mxu0 %v407
        %686 = vmatpush.bf16.msra.mxu0 %v399
        %687 = vmatpush.bf16.msra.mxu0 %v391
        %688 = vmatmul.bf16.gmra.mxu0 %v443
        %v689 = vpop.f32.mrf.mxu0
        %v690 = vadd.f32 0.0, %v689
        %v691 = vpop.f32.mrf.mxu0
        %v692 = vadd.f32 0.0, %v691
        %693 = vmatmul.bf16.gmra.mxu0 %v446
        %v694 = vpop.f32.mrf.mxu0
        %v695 = vadd.f32 0.0, %v694
        %v696 = vpop.f32.mrf.mxu0
        %v697 = vadd.f32 0.0, %v696
        %698 = vmatmul.bf16.gmra.mxu0 %v449
        %v699 = vpop.f32.mrf.mxu0
        %v700 = vadd.f32 0.0, %v699
        %v701 = vpop.f32.mrf.mxu0
        %v702 = vadd.f32 0.0, %v701
        %703 = vmatmul.bf16.gmra.mxu0 %v452
        %v704 = vpop.f32.mrf.mxu0
        %v705 = vadd.f32 0.0, %v704
        %v706 = vpop.f32.mrf.mxu0
        %v707 = vadd.f32 0.0, %v706
        %708 = vmatmul.bf16.gmra.mxu0 %v455
        %v709 = vpop.f32.mrf.mxu0
        %v710 = vadd.f32 0.0, %v709
        %v711 = vpop.f32.mrf.mxu0
        %712 = vdwg.mxu0
        %713 = vmatpush.bf16.msra.mxu0 0
        %714 = vmatpush.bf16.msra.mxu0 0
        %715 = vmatpush.bf16.msra.mxu0 0
        %716 = vmatpush.bf16.msra.mxu0 0
        %717 = vmatpush.bf16.msra.mxu0 %v480
        %718 = vmatpush.bf16.msra.mxu0 %v408
        %719 = vmatpush.bf16.msra.mxu0 %v400
        %720 = vmatpush.bf16.msra.mxu0 %v392
        %721 = vmatmul.bf16.gmra.mxu0 %v443
        %v722 = vpop.f32.mrf.mxu0
        %v723 = vadd.f32 0.0, %v722
        %v724 = vpop.f32.mrf.mxu0
        %v725 = vadd.f32 0.0, %v724
        %726 = vmatmul.bf16.gmra.mxu0 %v446
        %v727 = vpop.f32.mrf.mxu0
        %v728 = vadd.f32 0.0, %v727
        %v729 = vpop.f32.mrf.mxu0
        %v730 = vadd.f32 0.0, %v729
        %731 = vmatmul.bf16.gmra.mxu0 %v449
        %v732 = vpop.f32.mrf.mxu0
        %v733 = vadd.f32 0.0, %v732
        %v734 = vpop.f32.mrf.mxu0
        %v735 = vadd.f32 0.0, %v734
        %736 = vmatmul.bf16.gmra.mxu0 %v452
        %v737 = vpop.f32.mrf.mxu0
        %v738 = vadd.f32 0.0, %v737
        %v739 = vpop.f32.mrf.mxu0
        %v740 = vadd.f32 0.0, %v739
        %741 = vmatmul.bf16.gmra.mxu0 %v455
        %v742 = vpop.f32.mrf.mxu0
        %v743 = vadd.f32 0.0, %v742
        %v744 = vpop.f32.mrf.mxu0
        %745 = vdwg.mxu0
        %v746 = vld [vmem:[%s202] sm:$0xff]
        %v747 = vadd.f32 %v492, %v494
        %v748 = vadd.f32 %v747, %v497
        %v749 = vadd.f32 %v748, %v499
        %v750 = vadd.f32 %v749, %v502
        %v751 = vadd.f32 %v750, %v504
        %v752 = vadd.f32 %v751, %v507
        %v753 = vadd.f32 %v752, %v509
        %v754 = vadd.f32 %v753, %v512
        %v755 = vrot.slane %v754, 4
        %v756 = vadd.f32 %v754, %v755
        %v757 = vrot.slane %v756, 2
        %v758 = vadd.f32 %v756, %v757
        %v759 = vrot.slane %v758, 1
        %v760 = vadd.f32 %v758, %v759
        %v761 = vadd.f32 %v525, %v527
        %v762 = vadd.f32 %v761, %v530
        %v763 = vadd.f32 %v762, %v532
        %v764 = vadd.f32 %v763, %v535
        %v765 = vadd.f32 %v764, %v537
        %v766 = vadd.f32 %v765, %v540
        %v767 = vadd.f32 %v766, %v542
        %v768 = vadd.f32 %v767, %v545
        %v769 = vrot.slane %v768, 4
        %v770 = vadd.f32 %v768, %v769
        %v771 = vrot.slane %v770, 2
        %v772 = vadd.f32 %v770, %v771
        %v773 = vrot.slane %v772, 1
        %v774 = vadd.f32 %v772, %v773
        %v775 = vadd.f32 %v558, %v560
        %v776 = vadd.f32 %v775, %v563
        %v777 = vadd.f32 %v776, %v565
        %v778 = vadd.f32 %v777, %v568
        %v779 = vadd.f32 %v778, %v570
        %v780 = vadd.f32 %v779, %v573
        %v781 = vadd.f32 %v780, %v575
        %v782 = vadd.f32 %v781, %v578
        %v783 = vrot.slane %v782, 4
        %v784 = vadd.f32 %v782, %v783
        %v785 = vrot.slane %v784, 2
        %v786 = vadd.f32 %v784, %v785
        %v787 = vrot.slane %v786, 1
        %v788 = vadd.f32 %v786, %v787
        %v789 = vadd.f32 %v591, %v593
        %v790 = vadd.f32 %v789, %v596
        %v791 = vadd.f32 %v790, %v598
        %v792 = vadd.f32 %v791, %v601
        %v793 = vadd.f32 %v792, %v603
        %v794 = vadd.f32 %v793, %v606
        %v795 = vadd.f32 %v794, %v608
        %v796 = vadd.f32 %v795, %v611
        %v797 = vrot.slane %v796, 4
        %v798 = vadd.f32 %v796, %v797
        %v799 = vrot.slane %v798, 2
        %v800 = vadd.f32 %v798, %v799
        %v801 = vrot.slane %v800, 1
        %v802 = vadd.f32 %v800, %v801
        %v803 = vadd.f32 %v624, %v626
        %v804 = vadd.f32 %v803, %v629
        %v805 = vadd.f32 %v804, %v631
        %v806 = vadd.f32 %v805, %v634
        %v807 = vadd.f32 %v806, %v636
        %v808 = vadd.f32 %v807, %v639
        %v809 = vadd.f32 %v808, %v641
        %v810 = vadd.f32 %v809, %v644
        %v811 = vrot.slane %v810, 4
        %v812 = vadd.f32 %v810, %v811
        %v813 = vrot.slane %v812, 2
        %v814 = vadd.f32 %v812, %v813
        %v815 = vrot.slane %v814, 1
        %v816 = vadd.f32 %v814, %v815
        %v817 = vadd.f32 %v657, %v659
        %v818 = vadd.f32 %v817, %v662
        %v819 = vadd.f32 %v818, %v664
        %v820 = vadd.f32 %v819, %v667
        %v821 = vadd.f32 %v820, %v669
        %v822 = vadd.f32 %v821, %v672
        %v823 = vadd.f32 %v822, %v674
        %v824 = vadd.f32 %v823, %v677
        %v825 = vrot.slane %v824, 4
        %v826 = vadd.f32 %v824, %v825
        %v827 = vrot.slane %v826, 2
        %v828 = vadd.f32 %v826, %v827
        %v829 = vrot.slane %v828, 1
        %v830 = vadd.f32 %v828, %v829
        %v831 = vadd.f32 %v690, %v692
        %v832 = vadd.f32 %v831, %v695
        %v833 = vadd.f32 %v832, %v697
        %v834 = vadd.f32 %v833, %v700
        %v835 = vadd.f32 %v834, %v702
        %v836 = vadd.f32 %v835, %v705
        %v837 = vadd.f32 %v836, %v707
        %v838 = vadd.f32 %v837, %v710
        %v839 = vrot.slane %v838, 4
        %v840 = vadd.f32 %v838, %v839
        %v841 = vrot.slane %v840, 2
        %v842 = vadd.f32 %v840, %v841
        %v843 = vrot.slane %v842, 1
        %v844 = vadd.f32 %v842, %v843
        %v845 = vadd.f32 %v723, %v725
        %v846 = vadd.f32 %v845, %v728
        %v847 = vadd.f32 %v846, %v730
        %v848 = vadd.f32 %v847, %v733
        %v849 = vadd.f32 %v848, %v735
        %v850 = vadd.f32 %v849, %v738
        %v851 = vadd.f32 %v850, %v740
        %v852 = vadd.f32 %v851, %v743
        %v853 = vrot.slane %v852, 4
        %v854 = vadd.f32 %v852, %v853
        %v855 = vrot.slane %v854, 2
        %v856 = vadd.f32 %v854, %v855
        %v857 = vrot.slane %v856, 1
        %v858 = vadd.f32 %v856, %v857
        %v867 = vrot.slane %v774, 7
        %v868 = vrot.slane %v788, 6
        %v869 = vrot.slane %v802, 5
        %v870 = vrot.slane %v816, 4
        %v871 = vrot.slane %v830, 3
        %v872 = vrot.slane %v844, 2
        %v873 = vrot.slane %v858, 1
        %vm874 = vcmask 1040384
        %v875 = vsel %vm874, %v760, %v867
        %vm876 = vcmask 1042434
        %v877 = vsel %vm876, %v868, %v869
        %vm878 = vcmask 1041408
        %v879 = vsel %vm878, %v875, %v877
        %vm880 = vcmask 1044484
        %v881 = vsel %vm880, %v870, %v871
        %vm882 = vcmask 1046534
        %v883 = vsel %vm882, %v872, %v873
        %vm884 = vcmask 1045508
        %v885 = vsel %vm884, %v881, %v883
        %vm886 = vcmask 1043456
        %v887 = vsel %vm886, %v879, %v885
        %v889 = vadd.f32 %v746, %v887
        %890 = vst [vmem:[%s202] sm:$0xff] %v889
        %v891 = vld [vmem:[%s209] sm:$0xff]
        %v892 = vmul.f32 %v492, %v492
        %v893 = vmul.f32 %v525, %v525
        %v894 = vmul.f32 %v558, %v558
        %v895 = vmul.f32 %v591, %v591
        %v896 = vmul.f32 %v624, %v624
        %v897 = vmul.f32 %v657, %v657
        %v898 = vmul.f32 %v690, %v690
        %v899 = vmul.f32 %v723, %v723
        %v900 = vmul.f32 %v494, %v494
        %v901 = vmul.f32 %v527, %v527
        %v902 = vmul.f32 %v560, %v560
        %v903 = vmul.f32 %v593, %v593
        %v904 = vmul.f32 %v626, %v626
        %v905 = vmul.f32 %v659, %v659
        %v906 = vmul.f32 %v692, %v692
        %v907 = vmul.f32 %v725, %v725
        %v908 = vmul.f32 %v497, %v497
        %v909 = vmul.f32 %v530, %v530
        %v910 = vmul.f32 %v563, %v563
        %v911 = vmul.f32 %v596, %v596
        %v912 = vmul.f32 %v629, %v629
        %v913 = vmul.f32 %v662, %v662
        %v914 = vmul.f32 %v695, %v695
        %v915 = vmul.f32 %v728, %v728
        %v916 = vmul.f32 %v499, %v499
        %v917 = vmul.f32 %v532, %v532
        %v918 = vmul.f32 %v565, %v565
        %v919 = vmul.f32 %v598, %v598
        %v920 = vmul.f32 %v631, %v631
        %v921 = vmul.f32 %v664, %v664
        %v922 = vmul.f32 %v697, %v697
        %v923 = vmul.f32 %v730, %v730
        %v924 = vmul.f32 %v502, %v502
        %v925 = vmul.f32 %v535, %v535
        %v926 = vmul.f32 %v568, %v568
        %v927 = vmul.f32 %v601, %v601
        %v928 = vmul.f32 %v634, %v634
        %v929 = vmul.f32 %v667, %v667
        %v930 = vmul.f32 %v700, %v700
        %v931 = vmul.f32 %v733, %v733
        %v932 = vmul.f32 %v504, %v504
        %v933 = vmul.f32 %v537, %v537
        %v934 = vmul.f32 %v570, %v570
        %v935 = vmul.f32 %v603, %v603
        %v936 = vmul.f32 %v636, %v636
        %v937 = vmul.f32 %v669, %v669
        %v938 = vmul.f32 %v702, %v702
        %v939 = vmul.f32 %v735, %v735
        %v940 = vmul.f32 %v507, %v507
        %v941 = vmul.f32 %v540, %v540
        %v942 = vmul.f32 %v573, %v573
        %v943 = vmul.f32 %v606, %v606
        %v944 = vmul.f32 %v639, %v639
        %v945 = vmul.f32 %v672, %v672
        %v946 = vmul.f32 %v705, %v705
        %v947 = vmul.f32 %v738, %v738
        %v948 = vmul.f32 %v509, %v509
        %v949 = vmul.f32 %v542, %v542
        %v950 = vmul.f32 %v575, %v575
        %v951 = vmul.f32 %v608, %v608
        %v952 = vmul.f32 %v641, %v641
        %v953 = vmul.f32 %v674, %v674
        %v954 = vmul.f32 %v707, %v707
        %v955 = vmul.f32 %v740, %v740
        %v956 = vmul.f32 %v512, %v512
        %v957 = vmul.f32 %v545, %v545
        %v958 = vmul.f32 %v578, %v578
        %v959 = vmul.f32 %v611, %v611
        %v960 = vmul.f32 %v644, %v644
        %v961 = vmul.f32 %v677, %v677
        %v962 = vmul.f32 %v710, %v710
        %v963 = vmul.f32 %v743, %v743
        %v964 = vadd.f32 %v892, %v900
        %v965 = vadd.f32 %v964, %v908
        %v966 = vadd.f32 %v965, %v916
        %v967 = vadd.f32 %v966, %v924
        %v968 = vadd.f32 %v967, %v932
        %v969 = vadd.f32 %v968, %v940
        %v970 = vadd.f32 %v969, %v948
        %v971 = vadd.f32 %v970, %v956
        %v972 = vrot.slane %v971, 4
        %v973 = vadd.f32 %v971, %v972
        %v974 = vrot.slane %v973, 2
        %v975 = vadd.f32 %v973, %v974
        %v976 = vrot.slane %v975, 1
        %v977 = vadd.f32 %v975, %v976
        %v978 = vadd.f32 %v893, %v901
        %v979 = vadd.f32 %v978, %v909
        %v980 = vadd.f32 %v979, %v917
        %v981 = vadd.f32 %v980, %v925
        %v982 = vadd.f32 %v981, %v933
        %v983 = vadd.f32 %v982, %v941
        %v984 = vadd.f32 %v983, %v949
        %v985 = vadd.f32 %v984, %v957
        %v986 = vrot.slane %v985, 4
        %v987 = vadd.f32 %v985, %v986
        %v988 = vrot.slane %v987, 2
        %v989 = vadd.f32 %v987, %v988
        %v990 = vrot.slane %v989, 1
        %v991 = vadd.f32 %v989, %v990
        %v992 = vadd.f32 %v894, %v902
        %v993 = vadd.f32 %v992, %v910
        %v994 = vadd.f32 %v993, %v918
        %v995 = vadd.f32 %v994, %v926
        %v996 = vadd.f32 %v995, %v934
        %v997 = vadd.f32 %v996, %v942
        %v998 = vadd.f32 %v997, %v950
        %v999 = vadd.f32 %v998, %v958
        %v1000 = vrot.slane %v999, 4
        %v1001 = vadd.f32 %v999, %v1000
        %v1002 = vrot.slane %v1001, 2
        %v1003 = vadd.f32 %v1001, %v1002
        %v1004 = vrot.slane %v1003, 1
        %v1005 = vadd.f32 %v1003, %v1004
        %v1006 = vadd.f32 %v895, %v903
        %v1007 = vadd.f32 %v1006, %v911
        %v1008 = vadd.f32 %v1007, %v919
        %v1009 = vadd.f32 %v1008, %v927
        %v1010 = vadd.f32 %v1009, %v935
        %v1011 = vadd.f32 %v1010, %v943
        %v1012 = vadd.f32 %v1011, %v951
        %v1013 = vadd.f32 %v1012, %v959
        %v1014 = vrot.slane %v1013, 4
        %v1015 = vadd.f32 %v1013, %v1014
        %v1016 = vrot.slane %v1015, 2
        %v1017 = vadd.f32 %v1015, %v1016
        %v1018 = vrot.slane %v1017, 1
        %v1019 = vadd.f32 %v1017, %v1018
        %v1020 = vadd.f32 %v896, %v904
        %v1021 = vadd.f32 %v1020, %v912
        %v1022 = vadd.f32 %v1021, %v920
        %v1023 = vadd.f32 %v1022, %v928
        %v1024 = vadd.f32 %v1023, %v936
        %v1025 = vadd.f32 %v1024, %v944
        %v1026 = vadd.f32 %v1025, %v952
        %v1027 = vadd.f32 %v1026, %v960
        %v1028 = vrot.slane %v1027, 4
        %v1029 = vadd.f32 %v1027, %v1028
        %v1030 = vrot.slane %v1029, 2
        %v1031 = vadd.f32 %v1029, %v1030
        %v1032 = vrot.slane %v1031, 1
        %v1033 = vadd.f32 %v1031, %v1032
        %v1034 = vadd.f32 %v897, %v905
        %v1035 = vadd.f32 %v1034, %v913
        %v1036 = vadd.f32 %v1035, %v921
        %v1037 = vadd.f32 %v1036, %v929
        %v1038 = vadd.f32 %v1037, %v937
        %v1039 = vadd.f32 %v1038, %v945
        %v1040 = vadd.f32 %v1039, %v953
        %v1041 = vadd.f32 %v1040, %v961
        %v1042 = vrot.slane %v1041, 4
        %v1043 = vadd.f32 %v1041, %v1042
        %v1044 = vrot.slane %v1043, 2
        %v1045 = vadd.f32 %v1043, %v1044
        %v1046 = vrot.slane %v1045, 1
        %v1047 = vadd.f32 %v1045, %v1046
        %v1048 = vadd.f32 %v898, %v906
        %v1049 = vadd.f32 %v1048, %v914
        %v1050 = vadd.f32 %v1049, %v922
        %v1051 = vadd.f32 %v1050, %v930
        %v1052 = vadd.f32 %v1051, %v938
        %v1053 = vadd.f32 %v1052, %v946
        %v1054 = vadd.f32 %v1053, %v954
        %v1055 = vadd.f32 %v1054, %v962
        %v1056 = vrot.slane %v1055, 4
        %v1057 = vadd.f32 %v1055, %v1056
        %v1058 = vrot.slane %v1057, 2
        %v1059 = vadd.f32 %v1057, %v1058
        %v1060 = vrot.slane %v1059, 1
        %v1061 = vadd.f32 %v1059, %v1060
        %v1062 = vadd.f32 %v899, %v907
        %v1063 = vadd.f32 %v1062, %v915
        %v1064 = vadd.f32 %v1063, %v923
        %v1065 = vadd.f32 %v1064, %v931
        %v1066 = vadd.f32 %v1065, %v939
        %v1067 = vadd.f32 %v1066, %v947
        %v1068 = vadd.f32 %v1067, %v955
        %v1069 = vadd.f32 %v1068, %v963
        %v1070 = vrot.slane %v1069, 4
        %v1071 = vadd.f32 %v1069, %v1070
        %v1072 = vrot.slane %v1071, 2
        %v1073 = vadd.f32 %v1071, %v1072
        %v1074 = vrot.slane %v1073, 1
        %v1075 = vadd.f32 %v1073, %v1074
        %v1084 = vrot.slane %v991, 7
        %v1085 = vrot.slane %v1005, 6
        %v1086 = vrot.slane %v1019, 5
        %v1087 = vrot.slane %v1033, 4
        %v1088 = vrot.slane %v1047, 3
        %v1089 = vrot.slane %v1061, 2
        %v1090 = vrot.slane %v1075, 1
        %v1091 = vsel %vm874, %v977, %v1084
        %v1092 = vsel %vm876, %v1085, %v1086
        %v1093 = vsel %vm878, %v1091, %v1092
        %v1094 = vsel %vm880, %v1087, %v1088
        %v1095 = vsel %vm882, %v1089, %v1090
        %v1096 = vsel %vm884, %v1094, %v1095
        %v1097 = vsel %vm886, %v1093, %v1096
        %v1099 = vadd.f32 %v891, %v1097
        %1100 = vst [vmem:[%s209] sm:$0xff] %v1099
        %s1101 = sand.u32 %s91, 1
        %s1102 = scalar_lea.sflag [#allocation4], %s1101
        %s1103 = sand.u32 %s91, 1
        %s1104 = smul.addr %s1103, 8
        %s1105 = scalar_lea.vmem [#allocation5], %s1104
        %s1106 = sand.u32 %s117, 1
        %s1107 = scalar_lea.sflag [#allocation7], %s1106
        %s1108 = sand.u32 %s117, 1
        %s1109 = smul.addr %s1108, 8
        %s1110 = scalar_lea.vmem [#allocation6], %s1109
        // Predicated region
        $region37: #{tpu_custom_call.1} parent=27 // pred_check
          %p1111 = pneg %p101
        $region38: #{tpu_custom_call.1} parent=27 // pred_check_branch
          %1113 = sbr.rel (%p1111) target = $region40
        $region39: #{tpu_custom_call.1} parent=27 // pred_region
          %1115 = vsyncadd %s1102, 0
          %s1116 = smul.addr %s26, 8
          %s1117 = scalar_lea.hbm %s2, %s1116
          %s1119 = sshll.u32 %s1105, 4
          %s1120 = int_to_ptr.vmem [resolvable:$true] %s1119
          %s1121 = sshll.u32 %s1117, 4
          %s1122 = int_to_ptr.hbm [resolvable:$true] %s1121
          %1124 = dma.vmem_to_hbm [thread:$0]  %s1120, 128, %s1122, %s1102
        $region40: #{tpu_custom_call.1} parent=27 // pred_fallthru
          _
        // Predicated region
        $region41: #{tpu_custom_call.1} parent=27 // pred_check
          %p1125 = pneg %p127
        $region42: #{tpu_custom_call.1} parent=27 // pred_check_branch
          %1127 = sbr.rel (%p1125) target = $region44
        $region43: #{tpu_custom_call.1} parent=27 // pred_region
          %1129 = vsyncadd %s1107, 0
          %s1130 = smul.addr %s26, 8
          %s1131 = scalar_lea.hbm %s3, %s1130
          %s1133 = sshll.u32 %s1110, 4
          %s1134 = int_to_ptr.vmem [resolvable:$true] %s1133
          %s1135 = sshll.u32 %s1131, 4
          %s1136 = int_to_ptr.hbm [resolvable:$true] %s1135
          %1138 = dma.vmem_to_hbm [thread:$0]  %s1134, 128, %s1136, %s1107
        $region44: #{tpu_custom_call.1} parent=27 // pred_fallthru
          _
      $region28: #{tpu_custom_call.1} parent=5 // pred_fallthru
        _
      %p1139 = scmp.le.s32.totalorder 2, %s17
      // Predicated region
      $region45: #{tpu_custom_call.1} parent=5 // pred_check
        %p1140 = pneg %p1139
      $region46: #{tpu_custom_call.1} parent=5 // pred_check_branch
        %1142 = sbr.rel (%p1140) target = $region48
      $region47: #{tpu_custom_call.1} parent=5 // pred_region
        %s1143 = ssub.s32 %s17, 2
        // Predicated region
        $region49: #{tpu_custom_call.1} parent=47 // pred_check
          %p1144 = pneg %p107
        $region50: #{tpu_custom_call.1} parent=47 // pred_check_branch
          %1146 = sbr.rel (%p1144) target = $region52
        $region51: #{tpu_custom_call.1} parent=47 // pred_region
          %s1147 = sand.u32 %s92, 1
          %s1148 = scalar_lea.sflag [#allocation4], %s1147
          %s1149 = sand.u32 %s92, 1
          %s1150 = smul.addr %s1149, 8
          %s1151 = scalar_lea.vmem [#allocation5], %s1150
          %1153 = dma.done %s1148, 128
        $region52: #{tpu_custom_call.1} parent=47 // pred_fallthru
          _
        // Predicated region
        $region53: #{tpu_custom_call.1} parent=47 // pred_check
          %p1154 = pneg %p133
        $region54: #{tpu_custom_call.1} parent=47 // pred_check_branch
          %1156 = sbr.rel (%p1154) target = $region56
        $region55: #{tpu_custom_call.1} parent=47 // pred_region
          %s1157 = sand.u32 %s118, 1
          %s1158 = scalar_lea.sflag [#allocation7], %s1157
          %s1159 = sand.u32 %s118, 1
          %s1160 = smul.addr %s1159, 8
          %s1161 = scalar_lea.vmem [#allocation6], %s1160
          %1163 = dma.done %s1158, 128
        $region56: #{tpu_custom_call.1} parent=47 // pred_fallthru
          _
      $region48: #{tpu_custom_call.1} parent=5 // pred_fallthru
        _
    $region6: #{tpu_custom_call.1} parent=1 // loop_footer
      %s21 = sadd.s32 1, %s17
    $region7: #{tpu_custom_call.1} parent=1 // loop_footer_branch
      %16 = sbr.rel target = $region3
    $region8: #{tpu_custom_call.1} parent=1 // loop_exit
      _
    %1164 = vsyncpa [#allocation3], 1
    %s1165 = scalar_lea.sflag [#allocation3], 1
    %1166 = vsyncpa %s1165, 1
    %1167 = vsyncpa [#allocation4], 1
    %s1168 = scalar_lea.sflag [#allocation4], 1
    %1169 = vsyncpa %s1168, 1
    %1170 = vsyncpa [#allocation7], 1
    %s1171 = scalar_lea.sflag [#allocation7], 1
    %1172 = vsyncpa %s1171, 1

</llo_original>
